<compile_context>
chip_gen: v7x
topology: tpu7x:2x2x1
jax: 0.10.0
libtpu: 0.0.40
codegen_flags: <defaults>
</compile_context>

<pallas_src>
import jax
import jax.numpy as jnp
from jax import lax
from jax.experimental import pallas as pl
from jax.experimental.pallas import tpu as pltpu


def _cross_attention_kernel(code_ref, text_ref, wk_ref, wv_ref, bv_ref,
                            gamma_ref, beta_ref, att_ref, out_ref):
    # code_ref : [C, H]        (resident every grid step)
    # text_ref : [Bb, S, H]    (per-grid-step batch block)
    # wk_ref   : [H, H]        nn.Linear weight (PyTorch [out, in]), no bias
    # wv_ref   : [H, H]        nn.Linear weight
    # bv_ref   : [1, H]        nn.Linear bias for w_v
    # gamma/beta_ref : [1, H]  LayerNorm affine params
    # att_ref  : [Bb, C, S]
    # out_ref  : [Bb, C, H]
    Bb, S, H = text_ref.shape

    code = code_ref[...].astype(jnp.float32)                       # [C, H]
    # Flatten the batch block so the projections are one big MXU matmul.
    # (Splitting/merging the leading (sublane) dims is layout-cheap.)
    text = text_ref[...].astype(jnp.float32).reshape(Bb * S, H)    # [Bb*S, H]
    wk = wk_ref[...].astype(jnp.float32)                           # [H, H]
    wv = wv_ref[...].astype(jnp.float32)                           # [H, H]
    bv = bv_ref[...].astype(jnp.float32)                           # [1, H]
    gamma = gamma_ref[...].astype(jnp.float32)                     # [1, H]
    beta = beta_ref[...].astype(jnp.float32)                       # [1, H]

    # Contract the hidden dims directly -- no `.T` materialized in the kernel.
    contract_last = (((1,), (1,)), ((), ()))
    # K = text @ Wk^T, V_nobias = text @ Wv^T   (PyTorch Linear convention).
    k = lax.dot_general(text, wk, contract_last,
                        preferred_element_type=jnp.float32)        # [Bb*S, H]
    v = lax.dot_general(text, wv, contract_last,
                        preferred_element_type=jnp.float32)        # [Bb*S, H]

    # Scores for all Bb batches in one matmul: code @ K^T -> [C, Bb*S].
    scores = lax.dot_general(code, k, contract_last,
                             preferred_element_type=jnp.float32)   # [C, Bb*S]

    # Per-batch softmax, att@V and LayerNorm (short unrolled loop, Bb is small;
    # all slices below are static, so they stay within the lane layout cheaply).
    for b in range(Bb):
        s_b = scores[:, b * S:(b + 1) * S]                         # [C, S]
        m = jnp.max(s_b, axis=-1, keepdims=True)
        e = jnp.exp(s_b - m)
        denom = jnp.sum(e, axis=-1, keepdims=True)                 # [C, 1]
        # EUP approximate reciprocal + one Newton step -> f32-accurate, and the
        # normalization becomes a cheap multiply instead of a VALU divide.
        r = pl.reciprocal(denom, approx=True)
        r = r * (2.0 - denom * r)
        att = e * r                                                # [C, S]
        att_ref[b] = att.astype(att_ref.dtype)

        # weighted = att @ V_b + bv (bias folded after the contraction because
        # softmax rows sum to 1), then LayerNorm over H (eps=1e-5, biased var).
        w = jnp.dot(att, v[b * S:(b + 1) * S, :],
                    preferred_element_type=jnp.float32) + bv       # [C, H]
        mean = jnp.mean(w, axis=-1, keepdims=True)
        var = jnp.mean((w - mean) ** 2, axis=-1, keepdims=True)
        normed = (w - mean) * lax.rsqrt(var + 1e-5)
        out_ref[b] = (normed * gamma + beta).astype(out_ref.dtype)


def _vmem_bytes_estimate(Bb, S, H, C):
    """Rough f32 VMEM footprint (double-buffered blocks + live temporaries)."""
    f32 = 4
    const = 2 * (2 * H * H + C * H + 3 * H)          # weights / params blocks
    per_b = 2 * (S * H + C * S + C * H)              # text in + att/out outputs
    temps = 2 * S * H + C * S                        # k, v, scores live values
    return (const + Bb * (per_b + temps)) * f32


def _pick_batch_block(B, S, H, C, budget_bytes=40 * 1024 * 1024, max_bb=8):
    """Largest divisor of B (capped) whose VMEM estimate fits the budget."""
    best = 1
    for bb in range(1, min(B, max_bb) + 1):
        if B % bb == 0 and _vmem_bytes_estimate(bb, S, H, C) <= budget_bytes:
            best = bb
    return best


def cross_attention(code_features, text_features, attention_mask,
                    w_k, w_v, b_v, ln_gamma, ln_beta):
    """Pallas implementation of CrossAttention.forward.

    code_features: [C, H], text_features: [B, S, H], attention_mask: unused.
    Returns (att_weights [B, C, S], weighted_feature [B, C, H]).
    """
    del attention_mask  # unused in the reference forward
    C, H = code_features.shape
    B, S, _ = text_features.shape

    bv2 = b_v.reshape(1, H)
    gamma2 = ln_gamma.reshape(1, H)
    beta2 = ln_beta.reshape(1, H)

    Bb = _pick_batch_block(B, S, H, C)
    grid = (B // Bb,)

    # Explicit VMEM budget so large-H configurations stay inside v7x's 64 MiB.
    vmem_limit = min(max(2 * _vmem_bytes_estimate(Bb, S, H, C),
                         32 * 1024 * 1024),
                     64 * 1024 * 1024)

    grid_spec = pltpu.PrefetchScalarGridSpec(
        num_scalar_prefetch=0,
        grid=grid,
        in_specs=[
            pl.BlockSpec((C, H), lambda b: (0, 0)),         # code_features
            pl.BlockSpec((Bb, S, H), lambda b: (b, 0, 0)),  # text_features
            pl.BlockSpec((H, H), lambda b: (0, 0)),         # w_k
            pl.BlockSpec((H, H), lambda b: (0, 0)),         # w_v
            pl.BlockSpec((1, H), lambda b: (0, 0)),         # b_v
            pl.BlockSpec((1, H), lambda b: (0, 0)),         # ln gamma
            pl.BlockSpec((1, H), lambda b: (0, 0)),         # ln beta
        ],
        out_specs=[
            pl.BlockSpec((Bb, C, S), lambda b: (b, 0, 0)),  # att_weights
            pl.BlockSpec((Bb, C, H), lambda b: (b, 0, 0)),  # weighted_feature
        ],
    )

    att, out = pl.pallas_call(
        _cross_attention_kernel,
        out_shape=(
            jax.ShapeDtypeStruct((B, C, S), jnp.float32),
            jax.ShapeDtypeStruct((B, C, H), jnp.float32),
        ),
        grid_spec=grid_spec,
        compiler_params=pltpu.CompilerParams(
            dimension_semantics=("parallel",),
            vmem_limit_bytes=int(vmem_limit)),
    )(code_features, text_features, w_k, w_v, bv2, gamma2, beta2)
    return att, out


def cross_attention_ref(code_features, text_features, w_k, w_v, b_v,
                        ln_gamma, ln_beta):
    """Pure-JAX reference mirroring the PyTorch forward."""
    k = text_features @ w_k.T                         # [B, S, H]
    v = text_features @ w_v.T + b_v                   # [B, S, H]
    scores = jnp.einsum('ch,bsh->bcs', code_features, k)
    att = jax.nn.softmax(scores, axis=-1)             # [B, C, S]
    wf = jnp.einsum('bcs,bsh->bch', att, v)           # [B, C, H]
    mean = jnp.mean(wf, axis=-1, keepdims=True)
    var = jnp.mean((wf - mean) ** 2, axis=-1, keepdims=True)
    wf = (wf - mean) / jnp.sqrt(var + 1e-5) * ln_gamma + ln_beta
    return att, wf


if __name__ == "__main__":
    B, S, H, C = 2, 8, 32, 4   # batch, seq, hidden_size, num_codes

    key = jax.random.PRNGKey(0)
    k1, k2, k3, k4, k5, k6 = jax.random.split(key, 6)

    code_features = jax.random.normal(k1, (C, H), dtype=jnp.float32)
    text_features = jax.random.normal(k2, (B, S, H), dtype=jnp.float32)
    attention_mask = jnp.ones((B, S), dtype=jnp.float32)  # unused, as in reference

    # Parameter shapes from nn.Linear / nn.LayerNorm(hidden_size)
    w_k = jax.random.normal(k3, (H, H), dtype=jnp.float32) * 0.1
    w_v = jax.random.normal(k4, (H, H), dtype=jnp.float32) * 0.1
    b_v = jax.random.normal(k5, (H,), dtype=jnp.float32) * 0.1
    ln_gamma = jnp.ones((H,), dtype=jnp.float32)
    ln_beta = jnp.zeros((H,), dtype=jnp.float32)

    att, wf = cross_attention(code_features, text_features, attention_mask,
                              w_k, w_v, b_v, ln_gamma, ln_beta)
    jax.block_until_ready((att, wf))

    att_ref, wf_ref = cross_attention_ref(code_features, text_features,
                                          w_k, w_v, b_v, ln_gamma, ln_beta)
    assert att.shape == (B, C, S) and wf.shape == (B, C, H)
    assert jnp.allclose(att, att_ref, atol=1e-5, rtol=1e-5)
    assert jnp.allclose(wf, wf_ref, atol=1e-4, rtol=1e-4)

    print("KERNEL_OK")
</pallas_src>

<mosaic_0001>
module attributes {stable_mosaic.version = 11 : i64} {
  func.func @_cross_attention_kernel(%arg0: i32, %arg1: memref<4x32xf32, #tpu.memory_space<vmem>>, %arg2: memref<2x8x32xf32, #tpu.memory_space<vmem>>, %arg3: memref<32x32xf32, #tpu.memory_space<vmem>>, %arg4: memref<32x32xf32, #tpu.memory_space<vmem>>, %arg5: memref<1x32xf32, #tpu.memory_space<vmem>>, %arg6: memref<1x32xf32, #tpu.memory_space<vmem>>, %arg7: memref<1x32xf32, #tpu.memory_space<vmem>>, %arg8: memref<2x4x8xf32, #tpu.memory_space<vmem>>, %arg9: memref<2x4x32xf32, #tpu.memory_space<vmem>>) attributes {dimension_semantics = [#tpu.dimension_semantics<parallel>], iteration_bounds = array<i64: 1>, scalar_prefetch = 0 : i64, scratch_operands = 0 : i64, tpu.core_type = #tpu.core_type<tc>, window_params = [{pipeline_mode = #tpu.pipeline_mode<synchronous>, transform_indices = @transform_0, window_bounds = array<i64: 4, 32>}, {transform_indices = @transform_1, window_bounds = array<i64: 2, 8, 32>}, {pipeline_mode = #tpu.pipeline_mode<synchronous>, transform_indices = @transform_2, window_bounds = array<i64: 32, 32>}, {pipeline_mode = #tpu.pipeline_mode<synchronous>, transform_indices = @transform_3, window_bounds = array<i64: 32, 32>}, {pipeline_mode = #tpu.pipeline_mode<synchronous>, transform_indices = @transform_4, window_bounds = array<i64: 1, 32>}, {pipeline_mode = #tpu.pipeline_mode<synchronous>, transform_indices = @transform_5, window_bounds = array<i64: 1, 32>}, {pipeline_mode = #tpu.pipeline_mode<synchronous>, transform_indices = @transform_6, window_bounds = array<i64: 1, 32>}, {transform_indices = @transform_7, window_bounds = array<i64: 2, 4, 8>}, {transform_indices = @transform_8, window_bounds = array<i64: 2, 4, 32>}]} {
    %c0 = arith.constant 0 : index
    %c0_0 = arith.constant 0 : index
    %0 = vector.load %arg1[%c0, %c0_0] : memref<4x32xf32, #tpu.memory_space<vmem>>, vector<4x32xf32>
    %c0_1 = arith.constant 0 : index
    %c0_2 = arith.constant 0 : index
    %c0_3 = arith.constant 0 : index
    %1 = vector.load %arg2[%c0_1, %c0_2, %c0_3] : memref<2x8x32xf32, #tpu.memory_space<vmem>>, vector<2x8x32xf32>
    %2 = vector.shape_cast %1 : vector<2x8x32xf32> to vector<16x32xf32>
    %c0_4 = arith.constant 0 : index
    %c0_5 = arith.constant 0 : index
    %3 = vector.load %arg3[%c0_4, %c0_5] : memref<32x32xf32, #tpu.memory_space<vmem>>, vector<32x32xf32>
    %c0_6 = arith.constant 0 : index
    %c0_7 = arith.constant 0 : index
    %4 = vector.load %arg4[%c0_6, %c0_7] : memref<32x32xf32, #tpu.memory_space<vmem>>, vector<32x32xf32>
    %c0_8 = arith.constant 0 : index
    %c0_9 = arith.constant 0 : index
    %5 = vector.load %arg5[%c0_8, %c0_9] : memref<1x32xf32, #tpu.memory_space<vmem>>, vector<1x32xf32>
    %c0_10 = arith.constant 0 : index
    %c0_11 = arith.constant 0 : index
    %6 = vector.load %arg6[%c0_10, %c0_11] : memref<1x32xf32, #tpu.memory_space<vmem>>, vector<1x32xf32>
    %c0_12 = arith.constant 0 : index
    %c0_13 = arith.constant 0 : index
    %7 = vector.load %arg7[%c0_12, %c0_13] : memref<1x32xf32, #tpu.memory_space<vmem>>, vector<1x32xf32>
    %cst = arith.constant dense<0.000000e+00> : vector<16x32xf32>
    %8 = tpu.matmul %2, %3, %cst {dimension_numbers = #tpu.dot_dimension_numbers<[1], [1], [0], [0], [0, 0, 1, 0], [], []>} : vector<16x32xf32>, vector<32x32xf32>, vector<16x32xf32> -> vector<16x32xf32>
    %cst_14 = arith.constant dense<0.000000e+00> : vector<16x32xf32>
    %9 = tpu.matmul %2, %4, %cst_14 {dimension_numbers = #tpu.dot_dimension_numbers<[1], [1], [0], [0], [0, 0, 1, 0], [], []>} : vector<16x32xf32>, vector<32x32xf32>, vector<16x32xf32> -> vector<16x32xf32>
    %cst_15 = arith.constant dense<0.000000e+00> : vector<4x16xf32>
    %10 = tpu.matmul %0, %8, %cst_15 {dimension_numbers = #tpu.dot_dimension_numbers<[1], [1], [0], [0], [0, 0, 1, 0], [], []>} : vector<4x32xf32>, vector<16x32xf32>, vector<4x16xf32> -> vector<4x16xf32>
    %11 = vector.extract_strided_slice %10 {offsets = [0, 0], sizes = [4, 8], strides = [1, 1]} : vector<4x16xf32> to vector<4x8xf32>
    %cst_16 = arith.constant dense<0xFF800000> : vector<4xf32>
    %12 = vector.multi_reduction <maximumf>, %11, %cst_16 [1] : vector<4x8xf32> to vector<4xf32>
    %13 = vector.shape_cast %12 : vector<4xf32> to vector<4x1xf32>
    %14 = vector.broadcast %13 : vector<4x1xf32> to vector<4x8xf32>
    %15 = arith.subf %11, %14 : vector<4x8xf32>
    %16 = math.exp %15 : vector<4x8xf32>
    %cst_17 = arith.constant dense<0.000000e+00> : vector<4xf32>
    %17 = vector.multi_reduction <add>, %16, %cst_17 [1] : vector<4x8xf32> to vector<4xf32>
    %18 = vector.shape_cast %17 : vector<4xf32> to vector<4x1xf32>
    %19 = tpu.reciprocal %18 {approx = true} : vector<4x1xf32> -> vector<4x1xf32>
    %20 = arith.mulf %18, %19 : vector<4x1xf32>
    %cst_18 = arith.constant 2.000000e+00 : f32
    %21 = vector.broadcast %cst_18 : f32 to vector<4x1xf32>
    %22 = arith.subf %21, %20 : vector<4x1xf32>
    %23 = arith.mulf %19, %22 : vector<4x1xf32>
    %24 = vector.broadcast %23 : vector<4x1xf32> to vector<4x8xf32>
    %25 = arith.mulf %16, %24 : vector<4x8xf32>
    %c0_19 = arith.constant 0 : index
    %c0_20 = arith.constant 0 : index
    %c0_21 = arith.constant 0 : index
    %26 = vector.load %arg8[%c0_19, %c0_20, %c0_21] : memref<2x4x8xf32, #tpu.memory_space<vmem>>, vector<1x4x8xf32>
    %27 = vector.shape_cast %26 : vector<1x4x8xf32> to vector<4x8xf32>
    %28 = vector.shape_cast %25 : vector<4x8xf32> to vector<1x4x8xf32>
    tpu.vector_store %arg8[%c0_19, %c0_20, %c0_21], %28 {strides = array<i32>} : memref<2x4x8xf32, #tpu.memory_space<vmem>>, vector<1x4x8xf32>,
    %29 = vector.extract_strided_slice %9 {offsets = [0, 0], sizes = [8, 32], strides = [1, 1]} : vector<16x32xf32> to vector<8x32xf32>
    %cst_22 = arith.constant dense<0.000000e+00> : vector<4x32xf32>
    %30 = tpu.matmul %25, %29, %cst_22 {dimension_numbers = #tpu.dot_dimension_numbers<[1], [0], [0], [1], [0, 0, 1, 1], [], []>} : vector<4x8xf32>, vector<8x32xf32>, vector<4x32xf32> -> vector<4x32xf32>
    %31 = vector.broadcast %5 : vector<1x32xf32> to vector<4x32xf32>
    %32 = arith.addf %30, %31 : vector<4x32xf32>
    %cst_23 = arith.constant dense<0.000000e+00> : vector<4xf32>
    %33 = vector.multi_reduction <add>, %32, %cst_23 [1] : vector<4x32xf32> to vector<4xf32>
    %34 = vector.shape_cast %33 : vector<4xf32> to vector<4x1xf32>
    %cst_24 = arith.constant 3.200000e+01 : f32
    %35 = vector.broadcast %cst_24 : f32 to vector<4x1xf32>
    %36 = arith.divf %34, %35 : vector<4x1xf32>
    %37 = vector.broadcast %36 : vector<4x1xf32> to vector<4x32xf32>
    %38 = arith.subf %32, %37 : vector<4x32xf32>
    %39 = arith.mulf %38, %38 : vector<4x32xf32>
    %cst_25 = arith.constant dense<0.000000e+00> : vector<4xf32>
    %40 = vector.multi_reduction <add>, %39, %cst_25 [1] : vector<4x32xf32> to vector<4xf32>
    %41 = vector.shape_cast %40 : vector<4xf32> to vector<4x1xf32>
    %cst_26 = arith.constant 3.200000e+01 : f32
    %42 = vector.broadcast %cst_26 : f32 to vector<4x1xf32>
    %43 = arith.divf %41, %42 : vector<4x1xf32>
    %44 = vector.broadcast %36 : vector<4x1xf32> to vector<4x32xf32>
    %45 = arith.subf %32, %44 : vector<4x32xf32>
    %cst_27 = arith.constant 9.99999974E-6 : f32
    %46 = vector.broadcast %cst_27 : f32 to vector<4x1xf32>
    %47 = arith.addf %43, %46 : vector<4x1xf32>
    %48 = math.rsqrt %47 : vector<4x1xf32>
    %49 = vector.broadcast %48 : vector<4x1xf32> to vector<4x32xf32>
    %50 = arith.mulf %45, %49 : vector<4x32xf32>
    %51 = vector.broadcast %6 : vector<1x32xf32> to vector<4x32xf32>
    %52 = arith.mulf %50, %51 : vector<4x32xf32>
    %53 = vector.broadcast %7 : vector<1x32xf32> to vector<4x32xf32>
    %54 = arith.addf %52, %53 : vector<4x32xf32>
    %c0_28 = arith.constant 0 : index
    %c0_29 = arith.constant 0 : index
    %c0_30 = arith.constant 0 : index
    %55 = vector.load %arg9[%c0_28, %c0_29, %c0_30] : memref<2x4x32xf32, #tpu.memory_space<vmem>>, vector<1x4x32xf32>
    %56 = vector.shape_cast %55 : vector<1x4x32xf32> to vector<4x32xf32>
    %57 = vector.shape_cast %54 : vector<4x32xf32> to vector<1x4x32xf32>
    tpu.vector_store %arg9[%c0_28, %c0_29, %c0_30], %57 {strides = array<i32>} : memref<2x4x32xf32, #tpu.memory_space<vmem>>, vector<1x4x32xf32>,
    %58 = vector.extract_strided_slice %10 {offsets = [0, 8], sizes = [4, 8], strides = [1, 1]} : vector<4x16xf32> to vector<4x8xf32>
    %cst_31 = arith.constant dense<0xFF800000> : vector<4xf32>
    %59 = vector.multi_reduction <maximumf>, %58, %cst_31 [1] : vector<4x8xf32> to vector<4xf32>
    %60 = vector.shape_cast %59 : vector<4xf32> to vector<4x1xf32>
    %61 = vector.broadcast %60 : vector<4x1xf32> to vector<4x8xf32>
    %62 = arith.subf %58, %61 : vector<4x8xf32>
    %63 = math.exp %62 : vector<4x8xf32>
    %cst_32 = arith.constant dense<0.000000e+00> : vector<4xf32>
    %64 = vector.multi_reduction <add>, %63, %cst_32 [1] : vector<4x8xf32> to vector<4xf32>
    %65 = vector.shape_cast %64 : vector<4xf32> to vector<4x1xf32>
    %66 = tpu.reciprocal %65 {approx = true} : vector<4x1xf32> -> vector<4x1xf32>
    %67 = arith.mulf %65, %66 : vector<4x1xf32>
    %cst_33 = arith.constant 2.000000e+00 : f32
    %68 = vector.broadcast %cst_33 : f32 to vector<4x1xf32>
    %69 = arith.subf %68, %67 : vector<4x1xf32>
    %70 = arith.mulf %66, %69 : vector<4x1xf32>
    %71 = vector.broadcast %70 : vector<4x1xf32> to vector<4x8xf32>
    %72 = arith.mulf %63, %71 : vector<4x8xf32>
    %c1 = arith.constant 1 : index
    %c0_34 = arith.constant 0 : index
    %c0_35 = arith.constant 0 : index
    %73 = vector.load %arg8[%c1, %c0_34, %c0_35] : memref<2x4x8xf32, #tpu.memory_space<vmem>>, vector<1x4x8xf32>
    %74 = vector.shape_cast %73 : vector<1x4x8xf32> to vector<4x8xf32>
    %75 = vector.shape_cast %72 : vector<4x8xf32> to vector<1x4x8xf32>
    tpu.vector_store %arg8[%c1, %c0_34, %c0_35], %75 {strides = array<i32>} : memref<2x4x8xf32, #tpu.memory_space<vmem>>, vector<1x4x8xf32>,
    %76 = vector.extract_strided_slice %9 {offsets = [8, 0], sizes = [8, 32], strides = [1, 1]} : vector<16x32xf32> to vector<8x32xf32>
    %cst_36 = arith.constant dense<0.000000e+00> : vector<4x32xf32>
    %77 = tpu.matmul %72, %76, %cst_36 {dimension_numbers = #tpu.dot_dimension_numbers<[1], [0], [0], [1], [0, 0, 1, 1], [], []>} : vector<4x8xf32>, vector<8x32xf32>, vector<4x32xf32> -> vector<4x32xf32>
    %78 = vector.broadcast %5 : vector<1x32xf32> to vector<4x32xf32>
    %79 = arith.addf %77, %78 : vector<4x32xf32>
    %cst_37 = arith.constant dense<0.000000e+00> : vector<4xf32>
    %80 = vector.multi_reduction <add>, %79, %cst_37 [1] : vector<4x32xf32> to vector<4xf32>
    %81 = vector.shape_cast %80 : vector<4xf32> to vector<4x1xf32>
    %cst_38 = arith.constant 3.200000e+01 : f32
    %82 = vector.broadcast %cst_38 : f32 to vector<4x1xf32>
    %83 = arith.divf %81, %82 : vector<4x1xf32>
    %84 = vector.broadcast %83 : vector<4x1xf32> to vector<4x32xf32>
    %85 = arith.subf %79, %84 : vector<4x32xf32>
    %86 = arith.mulf %85, %85 : vector<4x32xf32>
    %cst_39 = arith.constant dense<0.000000e+00> : vector<4xf32>
    %87 = vector.multi_reduction <add>, %86, %cst_39 [1] : vector<4x32xf32> to vector<4xf32>
    %88 = vector.shape_cast %87 : vector<4xf32> to vector<4x1xf32>
    %cst_40 = arith.constant 3.200000e+01 : f32
    %89 = vector.broadcast %cst_40 : f32 to vector<4x1xf32>
    %90 = arith.divf %88, %89 : vector<4x1xf32>
    %91 = vector.broadcast %83 : vector<4x1xf32> to vector<4x32xf32>
    %92 = arith.subf %79, %91 : vector<4x32xf32>
    %cst_41 = arith.constant 9.99999974E-6 : f32
    %93 = vector.broadcast %cst_41 : f32 to vector<4x1xf32>
    %94 = arith.addf %90, %93 : vector<4x1xf32>
    %95 = math.rsqrt %94 : vector<4x1xf32>
    %96 = vector.broadcast %95 : vector<4x1xf32> to vector<4x32xf32>
    %97 = arith.mulf %92, %96 : vector<4x32xf32>
    %98 = vector.broadcast %6 : vector<1x32xf32> to vector<4x32xf32>
    %99 = arith.mulf %97, %98 : vector<4x32xf32>
    %100 = vector.broadcast %7 : vector<1x32xf32> to vector<4x32xf32>
    %101 = arith.addf %99, %100 : vector<4x32xf32>
    %c1_42 = arith.constant 1 : index
    %c0_43 = arith.constant 0 : index
    %c0_44 = arith.constant 0 : index
    %102 = vector.load %arg9[%c1_42, %c0_43, %c0_44] : memref<2x4x32xf32, #tpu.memory_space<vmem>>, vector<1x4x32xf32>
    %103 = vector.shape_cast %102 : vector<1x4x32xf32> to vector<4x32xf32>
    %104 = vector.shape_cast %101 : vector<4x32xf32> to vector<1x4x32xf32>
    tpu.vector_store %arg9[%c1_42, %c0_43, %c0_44], %104 {strides = array<i32>} : memref<2x4x32xf32, #tpu.memory_space<vmem>>, vector<1x4x32xf32>,
    return
  }
  func.func @transform_0(%arg0: i32) -> (i32, i32) {
    %c0_i32 = arith.constant 0 : i32
    %c0_i32_0 = arith.constant 0 : i32
    %c0_i32_1 = arith.constant 0 : i32
    return %c0_i32, %c0_i32_0 : i32, i32
  }
  func.func @transform_1(%arg0: i32) -> (i32, i32, i32) {
    %c0_i32 = arith.constant 0 : i32
    %c0_i32_0 = arith.constant 0 : i32
    %c0_i32_1 = arith.constant 0 : i32
    return %arg0, %c0_i32, %c0_i32_0 : i32, i32, i32
  }
  func.func @transform_2(%arg0: i32) -> (i32, i32) {
    %c0_i32 = arith.constant 0 : i32
    %c0_i32_0 = arith.constant 0 : i32
    %c0_i32_1 = arith.constant 0 : i32
    return %c0_i32, %c0_i32_0 : i32, i32
  }
  func.func @transform_3(%arg0: i32) -> (i32, i32) {
    %c0_i32 = arith.constant 0 : i32
    %c0_i32_0 = arith.constant 0 : i32
    %c0_i32_1 = arith.constant 0 : i32
    return %c0_i32, %c0_i32_0 : i32, i32
  }
  func.func @transform_4(%arg0: i32) -> (i32, i32) {
    %c0_i32 = arith.constant 0 : i32
    %c0_i32_0 = arith.constant 0 : i32
    %c0_i32_1 = arith.constant 0 : i32
    return %c0_i32, %c0_i32_0 : i32, i32
  }
  func.func @transform_5(%arg0: i32) -> (i32, i32) {
    %c0_i32 = arith.constant 0 : i32
    %c0_i32_0 = arith.constant 0 : i32
    %c0_i32_1 = arith.constant 0 : i32
    return %c0_i32, %c0_i32_0 : i32, i32
  }
  func.func @transform_6(%arg0: i32) -> (i32, i32) {
    %c0_i32 = arith.constant 0 : i32
    %c0_i32_0 = arith.constant 0 : i32
    %c0_i32_1 = arith.constant 0 : i32
    return %c0_i32, %c0_i32_0 : i32, i32
  }
  func.func @transform_7(%arg0: i32) -> (i32, i32, i32) {
    %c0_i32 = arith.constant 0 : i32
    %c0_i32_0 = arith.constant 0 : i32
    %c0_i32_1 = arith.constant 0 : i32
    return %arg0, %c0_i32, %c0_i32_0 : i32, i32, i32
  }
  func.func @transform_8(%arg0: i32) -> (i32, i32, i32) {
    %c0_i32 = arith.constant 0 : i32
    %c0_i32_0 = arith.constant 0 : i32
    %c0_i32_1 = arith.constant 0 : i32
    return %arg0, %c0_i32, %c0_i32_0 : i32, i32, i32
  }
}

</mosaic_0001>

<llo_original>
// kernel: tpu_custom_call.1
$region0: #{tpu_custom_call.1}
  #allocation0 [shape = 'u32[]', space=smem, size = 0x4, offset = 0x4, fixed_abs, tag = 'smem constant byte address 0x4 - core index']
  #allocation1 [shape = 'u32[144,128]{1,0:T(1,128)}', space=vmem, size = 0x12000, scoped, tag = 'internal scratch']
  %s0 = inlined_call_operand.hbm [shape: f32[4,32], index: 0, kind: input, shape index: {}]
  %s1 = inlined_call_operand.hbm [shape: f32[2,8,32], index: 1, kind: input, shape index: {}]
  %s2 = inlined_call_operand.hbm [shape: f32[32,32], index: 2, kind: input, shape index: {}]
  %s3 = inlined_call_operand.hbm [shape: f32[32,32], index: 3, kind: input, shape index: {}]
  %s4 = inlined_call_operand.vmem [shape: f32[1,32], index: 4, kind: input, shape index: {}]
  %s5 = inlined_call_operand.vmem [shape: f32[1,32], index: 5, kind: input, shape index: {}]
  %s6 = inlined_call_operand.vmem [shape: f32[1,32], index: 6, kind: input, shape index: {}]
  %s7 = inlined_call_operand.hbm [shape: f32[2,4,8], index: 7, kind: output, shape index: {0}]
  %s8 = inlined_call_operand.hbm [shape: f32[2,4,32], index: 8, kind: output, shape index: {1}]
  %9 = xla_tuple %s7, %s8
  %s10 = sld [smem:[#allocation0]]
  $region62: #{tpu_custom_call.1} parent=0
    _
  %s12 = ssub.s32 1, %s10
  %s13 = scalar_select 0, %s12, %s10
  $region1: #{tpu_custom_call.1} parent=0
    #allocation2 [shape = 'u8[2048]{0}', space=vmem, size = 0x800, scoped, tag = 'input window, operand 0, single buffered']
    #allocation3 [shape = 's32[1]{0}', space=sflag, size = 0x4, scoped, tag = 'scoped memory for tpu_custom_call.1']
    #allocation4 [shape = 's32[1]{0}', space=sflag, size = 0x4, scoped, tag = 'scoped memory for tpu_custom_call.1']
    #allocation5 [shape = 'u8[8192]{0}', space=vmem, size = 0x2000, scoped, tag = 'input window, operand 1, single buffered']
    #allocation6 [shape = 's32[1]{0}', space=sflag, size = 0x4, scoped, tag = 'scoped memory for tpu_custom_call.1']
    #allocation7 [shape = 'u8[16384]{0}', space=vmem, size = 0x4000, scoped, tag = 'input window, operand 2, single buffered']
    #allocation8 [shape = 'u8[16384]{0}', space=vmem, size = 0x4000, scoped, tag = 'input window, operand 3, single buffered']
    #allocation9 [shape = 's32[1]{0}', space=sflag, size = 0x4, scoped, tag = 'scoped memory for tpu_custom_call.1']
    #allocation10 [shape = 'u8[4096]{0}', space=vmem, size = 0x1000, scoped, tag = 'output window, operand 0, single buffered']
    #allocation11 [shape = 'u8[4096]{0}', space=vmem, size = 0x1000, scoped, tag = 'output window, operand 1, single buffered']
    #allocation12 [shape = 's32[1]{0}', space=sflag, size = 0x4, scoped, tag = 'scoped memory for tpu_custom_call.1']
    %14 = vsyncpa [#allocation3], 0
    %15 = vsyncpa [#allocation6], 0
    %16 = vsyncpa [#allocation9], 0
    %17 = vsyncpa [#allocation4], 0
    %18 = vsyncpa [#allocation12], 0
    // Predicated region
    $region2: #{tpu_custom_call.1} parent=1 // pred_check
      _
    $region3: #{tpu_custom_call.1} parent=1 // pred_check_branch
      %20 = sbr.rel (0) target = $region5
    $region4: #{tpu_custom_call.1} parent=1 // pred_region
      %s22 = ssub.s32 64, 64
      %23 = vsyncadd [#allocation3], %s22
      %s25 = sshll.u32 [#allocation2], 4
      %s26 = int_to_ptr.vmem [resolvable:$true] %s25
      %28 = dma.hbm_to_vmem [thread:$0]  %s0, 64, %s26, [#allocation3]
    $region5: #{tpu_custom_call.1} parent=1 // pred_fallthru
      _
    // Predicated region
    $region6: #{tpu_custom_call.1} parent=1 // pred_check
      _
    $region7: #{tpu_custom_call.1} parent=1 // pred_check_branch
      %30 = sbr.rel (0) target = $region9
    $region8: #{tpu_custom_call.1} parent=1 // pred_region
      %s32 = ssub.s32 256, 256
      %33 = vsyncadd [#allocation6], %s32
      %s34 = sshll.u32 [#allocation5], 4
      %s35 = int_to_ptr.vmem [resolvable:$true] %s34
      %40 = dma.hbm_to_vmem [thread:$0]  %s1, 256, %s35, [#allocation6], 128, 128, 8
    $region9: #{tpu_custom_call.1} parent=1 // pred_fallthru
      _
    // Predicated region
    $region10: #{tpu_custom_call.1} parent=1 // pred_check
      _
    $region11: #{tpu_custom_call.1} parent=1 // pred_check_branch
      %42 = sbr.rel (0) target = $region13
    $region12: #{tpu_custom_call.1} parent=1 // pred_region
      %s44 = ssub.s32 512, 512
      %45 = vsyncadd [#allocation6], %s44
      %s46 = sshll.u32 [#allocation7], 4
      %s47 = int_to_ptr.vmem [resolvable:$true] %s46
      %52 = dma.hbm_to_vmem [thread:$0]  %s2, 512, %s47, [#allocation6], 128, 128, 8
    $region13: #{tpu_custom_call.1} parent=1 // pred_fallthru
      _
    // Predicated region
    $region14: #{tpu_custom_call.1} parent=1 // pred_check
      _
    $region15: #{tpu_custom_call.1} parent=1 // pred_check_branch
      %54 = sbr.rel (0) target = $region17
    $region16: #{tpu_custom_call.1} parent=1 // pred_region
      %s56 = ssub.s32 512, 512
      %57 = vsyncadd [#allocation9], %s56
      %s58 = sshll.u32 [#allocation8], 4
      %s59 = int_to_ptr.vmem [resolvable:$true] %s58
      %64 = dma.hbm_to_vmem [thread:$0]  %s3, 512, %s59, [#allocation9], 128, 128, 8
    $region17: #{tpu_custom_call.1} parent=1 // pred_fallthru
      _
    // Predicated region
    $region18: #{tpu_custom_call.1} parent=1 // pred_check
      _
    $region19: #{tpu_custom_call.1} parent=1 // pred_check_branch
      %66 = sbr.rel (0) target = $region21
    $region20: #{tpu_custom_call.1} parent=1 // pred_region
      _
    $region21: #{tpu_custom_call.1} parent=1 // pred_fallthru
      _
    // Predicated region
    $region22: #{tpu_custom_call.1} parent=1 // pred_check
      _
    $region23: #{tpu_custom_call.1} parent=1 // pred_check_branch
      %68 = sbr.rel (0) target = $region25
    $region24: #{tpu_custom_call.1} parent=1 // pred_region
      _
    $region25: #{tpu_custom_call.1} parent=1 // pred_fallthru
      _
    // Predicated region
    $region26: #{tpu_custom_call.1} parent=1 // pred_check
      _
    $region27: #{tpu_custom_call.1} parent=1 // pred_check_branch
      %70 = sbr.rel (0) target = $region29
    $region28: #{tpu_custom_call.1} parent=1 // pred_region
      _
    $region29: #{tpu_custom_call.1} parent=1 // pred_fallthru
      _
    // Predicated region
    $region30: #{tpu_custom_call.1} parent=1 // pred_check
      _
    $region31: #{tpu_custom_call.1} parent=1 // pred_check_branch
      %72 = sbr.rel (0) target = $region33
    $region32: #{tpu_custom_call.1} parent=1 // pred_region
      %73 = dma.done [#allocation3], 64
    $region33: #{tpu_custom_call.1} parent=1 // pred_fallthru
      _
    // Predicated region
    $region34: #{tpu_custom_call.1} parent=1 // pred_check
      _
    $region35: #{tpu_custom_call.1} parent=1 // pred_check_branch
      %75 = sbr.rel (0) target = $region37
    $region36: #{tpu_custom_call.1} parent=1 // pred_region
      %76 = dma.done [#allocation6], 256
    $region37: #{tpu_custom_call.1} parent=1 // pred_fallthru
      _
    // Predicated region
    $region38: #{tpu_custom_call.1} parent=1 // pred_check
      _
    $region39: #{tpu_custom_call.1} parent=1 // pred_check_branch
      %78 = sbr.rel (0) target = $region41
    $region40: #{tpu_custom_call.1} parent=1 // pred_region
      %79 = dma.done [#allocation6], 512
    $region41: #{tpu_custom_call.1} parent=1 // pred_fallthru
      _
    // Predicated region
    $region42: #{tpu_custom_call.1} parent=1 // pred_check
      _
    $region43: #{tpu_custom_call.1} parent=1 // pred_check_branch
      %81 = sbr.rel (0) target = $region45
    $region44: #{tpu_custom_call.1} parent=1 // pred_region
      %82 = dma.done [#allocation9], 512
    $region45: #{tpu_custom_call.1} parent=1 // pred_fallthru
      _
    %v83 = vld [vmem:[#allocation2] sm:$0xf]
    %v84 = vld [vmem:[#allocation5] sm:$0xff]
    %v85 = vld [vmem:[#allocation5 + $0x8] sm:$0xff]
    %v86 = vld [vmem:[#allocation7] sm:$0xff]
    %v87 = vld [vmem:[#allocation7 + $0x8] sm:$0xff]
    %v88 = vld [vmem:[#allocation7 + $0x10] sm:$0xff]
    %v89 = vld [vmem:[#allocation7 + $0x18] sm:$0xff]
    %v90 = vld [vmem:[#allocation8] sm:$0xff]
    %v91 = vld [vmem:[#allocation8 + $0x8] sm:$0xff]
    %v92 = vld [vmem:[#allocation8 + $0x10] sm:$0xff]
    %v93 = vld [vmem:[#allocation8 + $0x18] sm:$0xff]
    %v94 = vld [vmem:[%s4] sm:$0x1]
    %v95 = vld [vmem:[%s5] sm:$0x1]
    %v96 = vld [vmem:[%s6] sm:$0x1]
    %vm97 = vcmask 261120
    %v99 = vsel %vm97, %v84, 0
    %v102 = vsel %vm97, %v85, 0
    %v105 = vsel %vm97, %v86, 0
    %v108 = vsel %vm97, %v87, 0
    %v111 = vsel %vm97, %v88, 0
    %v114 = vsel %vm97, %v89, 0
    %116 = vmatprep.subr.mxu0 0.0
    %117 = vmatpush1.xpose.msra.mxu0 %v105
    %118 = vmatprep.subr.mxu0 0.0
    %119 = vmatpush1.xpose.msra.mxu0 %v108
    %120 = vmatprep.subr.mxu0 0.0
    %121 = vmatpush1.xpose.msra.mxu0 %v111
    %122 = vmatprep.subr.mxu0 0.0
    %123 = vmatpush1.xpose.msra.mxu0 %v114
    %124 = vmatprep.subr.mxu0 0.0
    %125 = vmatpush1.xpose.msra.mxu0 0.0
    %126 = vmatprep.subr.mxu0 0.0
    %127 = vmatpush1.xpose.msra.mxu0 0.0
    %128 = vmatprep.subr.mxu0 0.0
    %129 = vmatpush1.xpose.msra.mxu0 0.0
    %130 = vmatprep.subr.mxu0 0.0
    %131 = vmatpush1.xpose.msra.mxu0 0.0
    %132 = vmatprep.subr.mxu0 0.0
    %133 = vmatpush1.xpose.msra.mxu0 0.0
    %134 = vmatprep.subr.mxu0 0.0
    %135 = vmatpush1.xpose.msra.mxu0 0.0
    %136 = vmatprep.subr.mxu0 0.0
    %137 = vmatpush1.xpose.msra.mxu0 0.0
    %138 = vmatprep.subr.mxu0 0.0
    %139 = vmatpush1.xpose.msra.mxu0 0.0
    %140 = vmatprep.subr.mxu0 0.0
    %141 = vmatpush1.xpose.msra.mxu0 0.0
    %142 = vmatprep.subr.mxu0 0.0
    %143 = vmatpush1.xpose.msra.mxu0 0.0
    %144 = vmatprep.subr.mxu0 0.0
    %145 = vmatpush1.xpose.msra.mxu0 0.0
    %146 = vmatprep.subr.mxu0 0.0
    %147 = vmatpush1.xpose.msra.mxu0 0.0
    %148 = vmatprep.subr.mxu0 0.0
    %149 = vmatpush1.xpose.msra.mxu0 0.0
    %150 = vmatprep.subr.mxu0 0.0
    %151 = vmatpush1.xpose.msra.mxu0 0.0
    %152 = vmatprep.subr.mxu0 0.0
    %153 = vmatpush1.xpose.msra.mxu0 0.0
    %154 = vmatprep.subr.mxu0 0.0
    %155 = vmatpush1.xpose.msra.mxu0 0.0
    %156 = vmatprep.subr.mxu0 0.0
    %157 = vmatpush1.xpose.msra.mxu0 0.0
    %158 = vmatprep.subr.mxu0 0.0
    %159 = vmatpush1.xpose.msra.mxu0 0.0
    %160 = vmatprep.subr.mxu0 0.0
    %161 = vmatpush1.xpose.msra.mxu0 0.0
    %162 = vmatprep.subr.mxu0 0.0
    %163 = vmatpush1.xpose.msra.mxu0 0.0
    %164 = vmatprep.subr.mxu0 0.0
    %165 = vmatpush1.xpose.msra.mxu0 0.0
    %166 = vmatprep.subr.mxu0 0.0
    %167 = vmatpush1.xpose.msra.mxu0 0.0
    %168 = vmatprep.subr.mxu0 0.0
    %169 = vmatpush1.xpose.msra.mxu0 0.0
    %170 = vmatprep.subr.mxu0 0.0
    %171 = vmatpush1.xpose.msra.mxu0 0.0
    %172 = vmatprep.subr.mxu0 0.0
    %173 = vmatpush1.xpose.msra.mxu0 0.0
    %174 = vmatprep.subr.mxu0 0.0
    %175 = vmatpush1.xpose.msra.mxu0 0.0
    %176 = vmatprep.subr.mxu0 0.0
    %177 = vmatpush1.xpose.msra.mxu0 0.0
    %178 = vmatprep.subr.mxu0 0.0
    %179 = vmatpush1.xpose.msra.mxu0 0.0
    %180 = vmatprep.mubr.f32.mxu0 0.0
    %181 = vmatmul.mubr.f32.gmra.mrb[0].mxu0 %v99
    %v182 = vpop.f32.mrb[0].mxu0
    %v183 = vadd.f32 0.0, %v182
    %v184 = vpop.f32.mrb[0].mxu0
    %185 = vmatprep.mubr.f32.mxu0 0.0
    %186 = vmatmul.mubr.f32.gmra.mrb[0].mxu0 %v102
    %v187 = vpop.f32.mrb[0].mxu0
    %v188 = vadd.f32 0.0, %v187
    %v189 = vpop.f32.mrb[0].mxu0
    %190 = vdwg.mxu0
    %v192 = vsel %vm97, %v90, 0
    %v195 = vsel %vm97, %v91, 0
    %v198 = vsel %vm97, %v92, 0
    %v201 = vsel %vm97, %v93, 0
    %203 = vmatprep.subr.mxu0 0.0
    %204 = vmatpush1.xpose.msra.mxu0 %v192
    %205 = vmatprep.subr.mxu0 0.0
    %206 = vmatpush1.xpose.msra.mxu0 %v195
    %207 = vmatprep.subr.mxu0 0.0
    %208 = vmatpush1.xpose.msra.mxu0 %v198
    %209 = vmatprep.subr.mxu0 0.0
    %210 = vmatpush1.xpose.msra.mxu0 %v201
    %211 = vmatprep.subr.mxu0 0.0
    %212 = vmatpush1.xpose.msra.mxu0 0.0
    %213 = vmatprep.subr.mxu0 0.0
    %214 = vmatpush1.xpose.msra.mxu0 0.0
    %215 = vmatprep.subr.mxu0 0.0
    %216 = vmatpush1.xpose.msra.mxu0 0.0
    %217 = vmatprep.subr.mxu0 0.0
    %218 = vmatpush1.xpose.msra.mxu0 0.0
    %219 = vmatprep.subr.mxu0 0.0
    %220 = vmatpush1.xpose.msra.mxu0 0.0
    %221 = vmatprep.subr.mxu0 0.0
    %222 = vmatpush1.xpose.msra.mxu0 0.0
    %223 = vmatprep.subr.mxu0 0.0
    %224 = vmatpush1.xpose.msra.mxu0 0.0
    %225 = vmatprep.subr.mxu0 0.0
    %226 = vmatpush1.xpose.msra.mxu0 0.0
    %227 = vmatprep.subr.mxu0 0.0
    %228 = vmatpush1.xpose.msra.mxu0 0.0
    %229 = vmatprep.subr.mxu0 0.0
    %230 = vmatpush1.xpose.msra.mxu0 0.0
    %231 = vmatprep.subr.mxu0 0.0
    %232 = vmatpush1.xpose.msra.mxu0 0.0
    %233 = vmatprep.subr.mxu0 0.0
    %234 = vmatpush1.xpose.msra.mxu0 0.0
    %235 = vmatprep.subr.mxu0 0.0
    %236 = vmatpush1.xpose.msra.mxu0 0.0
    %237 = vmatprep.subr.mxu0 0.0
    %238 = vmatpush1.xpose.msra.mxu0 0.0
    %239 = vmatprep.subr.mxu0 0.0
    %240 = vmatpush1.xpose.msra.mxu0 0.0
    %241 = vmatprep.subr.mxu0 0.0
    %242 = vmatpush1.xpose.msra.mxu0 0.0
    %243 = vmatprep.subr.mxu0 0.0
    %244 = vmatpush1.xpose.msra.mxu0 0.0
    %245 = vmatprep.subr.mxu0 0.0
    %246 = vmatpush1.xpose.msra.mxu0 0.0
    %247 = vmatprep.subr.mxu0 0.0
    %248 = vmatpush1.xpose.msra.mxu0 0.0
    %249 = vmatprep.subr.mxu0 0.0
    %250 = vmatpush1.xpose.msra.mxu0 0.0
    %251 = vmatprep.subr.mxu0 0.0
    %252 = vmatpush1.xpose.msra.mxu0 0.0
    %253 = vmatprep.subr.mxu0 0.0
    %254 = vmatpush1.xpose.msra.mxu0 0.0
    %255 = vmatprep.subr.mxu0 0.0
    %256 = vmatpush1.xpose.msra.mxu0 0.0
    %257 = vmatprep.subr.mxu0 0.0
    %258 = vmatpush1.xpose.msra.mxu0 0.0
    %259 = vmatprep.subr.mxu0 0.0
    %260 = vmatpush1.xpose.msra.mxu0 0.0
    %261 = vmatprep.subr.mxu0 0.0
    %262 = vmatpush1.xpose.msra.mxu0 0.0
    %263 = vmatprep.subr.mxu0 0.0
    %264 = vmatpush1.xpose.msra.mxu0 0.0
    %265 = vmatprep.subr.mxu0 0.0
    %266 = vmatpush1.xpose.msra.mxu0 0.0
    %267 = vmatprep.mubr.f32.mxu0 0.0
    %268 = vmatmul.mubr.f32.gmra.mrb[0].mxu0 %v99
    %v269 = vpop.f32.mrb[0].mxu0
    %v270 = vadd.f32 0.0, %v269
    %v271 = vpop.f32.mrb[0].mxu0
    %272 = vmatprep.mubr.f32.mxu0 0.0
    %273 = vmatmul.mubr.f32.gmra.mrb[0].mxu0 %v102
    %v274 = vpop.f32.mrb[0].mxu0
    %v275 = vadd.f32 0.0, %v274
    %v276 = vpop.f32.mrb[0].mxu0
    %277 = vdwg.mxu0
    %v279 = vsel %vm97, %v83, 0
    %v282 = vsel %vm97, %v183, 0
    %v285 = vsel %vm97, %v188, 0
    %287 = vmatprep.subr.mxu0 0.0
    %288 = vmatpush1.xpose.msra.mxu0 %v282
    %289 = vmatprep.subr.mxu0 0.0
    %290 = vmatpush1.xpose.msra.mxu0 %v285
    %291 = vmatprep.subr.mxu0 0.0
    %292 = vmatpush1.xpose.msra.mxu0 0.0
    %293 = vmatprep.subr.mxu0 0.0
    %294 = vmatpush1.xpose.msra.mxu0 0.0
    %295 = vmatprep.subr.mxu0 0.0
    %296 = vmatpush1.xpose.msra.mxu0 0.0
    %297 = vmatprep.subr.mxu0 0.0
    %298 = vmatpush1.xpose.msra.mxu0 0.0
    %299 = vmatprep.subr.mxu0 0.0
    %300 = vmatpush1.xpose.msra.mxu0 0.0
    %301 = vmatprep.subr.mxu0 0.0
    %302 = vmatpush1.xpose.msra.mxu0 0.0
    %303 = vmatprep.subr.mxu0 0.0
    %304 = vmatpush1.xpose.msra.mxu0 0.0
    %305 = vmatprep.subr.mxu0 0.0
    %306 = vmatpush1.xpose.msra.mxu0 0.0
    %307 = vmatprep.subr.mxu0 0.0
    %308 = vmatpush1.xpose.msra.mxu0 0.0
    %309 = vmatprep.subr.mxu0 0.0
    %310 = vmatpush1.xpose.msra.mxu0 0.0
    %311 = vmatprep.subr.mxu0 0.0
    %312 = vmatpush1.xpose.msra.mxu0 0.0
    %313 = vmatprep.subr.mxu0 0.0
    %314 = vmatpush1.xpose.msra.mxu0 0.0
    %315 = vmatprep.subr.mxu0 0.0
    %316 = vmatpush1.xpose.msra.mxu0 0.0
    %317 = vmatprep.subr.mxu0 0.0
    %318 = vmatpush1.xpose.msra.mxu0 0.0
    %319 = vmatprep.subr.mxu0 0.0
    %320 = vmatpush1.xpose.msra.mxu0 0.0
    %321 = vmatprep.subr.mxu0 0.0
    %322 = vmatpush1.xpose.msra.mxu0 0.0
    %323 = vmatprep.subr.mxu0 0.0
    %324 = vmatpush1.xpose.msra.mxu0 0.0
    %325 = vmatprep.subr.mxu0 0.0
    %326 = vmatpush1.xpose.msra.mxu0 0.0
    %327 = vmatprep.subr.mxu0 0.0
    %328 = vmatpush1.xpose.msra.mxu0 0.0
    %329 = vmatprep.subr.mxu0 0.0
    %330 = vmatpush1.xpose.msra.mxu0 0.0
    %331 = vmatprep.subr.mxu0 0.0
    %332 = vmatpush1.xpose.msra.mxu0 0.0
    %333 = vmatprep.subr.mxu0 0.0
    %334 = vmatpush1.xpose.msra.mxu0 0.0
    %335 = vmatprep.subr.mxu0 0.0
    %336 = vmatpush1.xpose.msra.mxu0 0.0
    %337 = vmatprep.subr.mxu0 0.0
    %338 = vmatpush1.xpose.msra.mxu0 0.0
    %339 = vmatprep.subr.mxu0 0.0
    %340 = vmatpush1.xpose.msra.mxu0 0.0
    %341 = vmatprep.subr.mxu0 0.0
    %342 = vmatpush1.xpose.msra.mxu0 0.0
    %343 = vmatprep.subr.mxu0 0.0
    %344 = vmatpush1.xpose.msra.mxu0 0.0
    %345 = vmatprep.subr.mxu0 0.0
    %346 = vmatpush1.xpose.msra.mxu0 0.0
    %347 = vmatprep.subr.mxu0 0.0
    %348 = vmatpush1.xpose.msra.mxu0 0.0
    %349 = vmatprep.subr.mxu0 0.0
    %350 = vmatpush1.xpose.msra.mxu0 0.0
    %351 = vmatprep.mubr.f32.mxu0 0.0
    %352 = vmatmul.mubr.f32.gmra.mrb[0].mxu0 %v279
    %v353 = vpop.f32.mrb[0].mxu0
    %v354 = vadd.f32 0.0, %v353
    %v355 = vpop.f32.mrb[0].mxu0
    %356 = vdwg.mxu0
    %vm357 = vcmask 60416
    %v358 = vsel %vm357, %v354, -inf
    %359 = vmax.xlane.f32.xlu0 %v358
    %v360 = vpop.xlane.xlu0 %359
    %v361 = vsub.f32 %v354, %v360
    %v362 = vmul.f32 %v361, 1.442695
    %v363 = vpow.pop %v362
    %v364 = vsel %vm357, %v363, 0.0
    %365 = vadd.xlane.f32.xlu0 %v364
    %v366 = vpop.xlane.xlu0 %365
    %v367 = vrcp.pop %v366
    %v368 = vmul.f32 %v366, %v367
    %v369 = vsub.f32 2.0, %v368
    %v370 = vmul.f32 %v367, %v369
    %v371 = vmul.f32 %v363, %v370
    %372 = vst.msk [vmem:[#allocation10] sm:$0xf] %vm357, %v371
    %v374 = vlaneseq
    %v375 = vshrl.u32 %v374, 7
    %v376 = vsub.s32 0, %v375
    %v377 = vrot.slane %v94, %v376
    %vm379 = vcmask 64512
    %v381 = vsel %vm379, %v371, 0
    %383 = vmatprep.subr.mxu0 0.0
    %384 = vmatpush1.msra.mxu0 %v270
    %385 = vmatprep.subr.mxu0 0.0
    %386 = vmatpush1.msra.mxu0 0.0
    %387 = vmatprep.subr.mxu0 0.0
    %388 = vmatpush1.msra.mxu0 0.0
    %389 = vmatprep.subr.mxu0 0.0
    %390 = vmatpush1.msra.mxu0 0.0
    %391 = vmatprep.subr.mxu0 0.0
    %392 = vmatpush1.msra.mxu0 0.0
    %393 = vmatprep.subr.mxu0 0.0
    %394 = vmatpush1.msra.mxu0 0.0
    %395 = vmatprep.subr.mxu0 0.0
    %396 = vmatpush1.msra.mxu0 0.0
    %397 = vmatprep.subr.mxu0 0.0
    %398 = vmatpush1.msra.mxu0 0.0
    %399 = vmatprep.subr.mxu0 0.0
    %400 = vmatpush1.msra.mxu0 0.0
    %401 = vmatprep.subr.mxu0 0.0
    %402 = vmatpush1.msra.mxu0 0.0
    %403 = vmatprep.subr.mxu0 0.0
    %404 = vmatpush1.msra.mxu0 0.0
    %405 = vmatprep.subr.mxu0 0.0
    %406 = vmatpush1.msra.mxu0 0.0
    %407 = vmatprep.subr.mxu0 0.0
    %408 = vmatpush1.msra.mxu0 0.0
    %409 = vmatprep.subr.mxu0 0.0
    %410 = vmatpush1.msra.mxu0 0.0
    %411 = vmatprep.subr.mxu0 0.0
    %412 = vmatpush1.msra.mxu0 0.0
    %413 = vmatprep.subr.mxu0 0.0
    %414 = vmatpush1.msra.mxu0 0.0
    %415 = vmatprep.subr.mxu0 0.0
    %416 = vmatpush1.msra.mxu0 0.0
    %417 = vmatprep.subr.mxu0 0.0
    %418 = vmatpush1.msra.mxu0 0.0
    %419 = vmatprep.subr.mxu0 0.0
    %420 = vmatpush1.msra.mxu0 0.0
    %421 = vmatprep.subr.mxu0 0.0
    %422 = vmatpush1.msra.mxu0 0.0
    %423 = vmatprep.subr.mxu0 0.0
    %424 = vmatpush1.msra.mxu0 0.0
    %425 = vmatprep.subr.mxu0 0.0
    %426 = vmatpush1.msra.mxu0 0.0
    %427 = vmatprep.subr.mxu0 0.0
    %428 = vmatpush1.msra.mxu0 0.0
    %429 = vmatprep.subr.mxu0 0.0
    %430 = vmatpush1.msra.mxu0 0.0
    %431 = vmatprep.subr.mxu0 0.0
    %432 = vmatpush1.msra.mxu0 0.0
    %433 = vmatprep.subr.mxu0 0.0
    %434 = vmatpush1.msra.mxu0 0.0
    %435 = vmatprep.subr.mxu0 0.0
    %436 = vmatpush1.msra.mxu0 0.0
    %437 = vmatprep.subr.mxu0 0.0
    %438 = vmatpush1.msra.mxu0 0.0
    %439 = vmatprep.subr.mxu0 0.0
    %440 = vmatpush1.msra.mxu0 0.0
    %441 = vmatprep.subr.mxu0 0.0
    %442 = vmatpush1.msra.mxu0 0.0
    %443 = vmatprep.subr.mxu0 0.0
    %444 = vmatpush1.msra.mxu0 0.0
    %445 = vmatprep.subr.mxu0 0.0
    %446 = vmatpush1.msra.mxu0 0.0
    %447 = vmatprep.mubr.f32.mxu0 0.0
    %448 = vmatmul.mubr.f32.gmra.mrb[0].mxu0 %v381
    %v449 = vpop.f32.mrb[0].mxu0
    %v450 = vadd.f32 %v377, %v449
    %v451 = vpop.f32.mrb[0].mxu0
    %452 = vdwg.mxu0
    %vm453 = vcmask 257024
    %v454 = vsel %vm453, %v450, 0.0
    %455 = vadd.xlane.f32.xlu0 %v454
    %v456 = vpop.xlane.xlu0 %455
    %v457 = vrcp.pop 32.0
    %v458 = vmul.f32 %v456, %v457
    %v459 = vsub.f32 %v450, %v458
    %v460 = vmul.f32 %v459, %v459
    %v461 = vsel %vm453, %v460, 0.0
    %462 = vadd.xlane.f32.xlu0 %v461
    %v463 = vpop.xlane.xlu0 %462
    %v464 = vmul.f32 %v463, %v457
    %v465 = vadd.f32 %v464, 1e-05
    %v466 = vrsqrt.pop %v465
    %v467 = vmul.f32 %v459, %v466
    %v469 = vlaneseq
    %v470 = vshrl.u32 %v469, 7
    %v471 = vsub.s32 0, %v470
    %v472 = vrot.slane %v95, %v471
    %v474 = vmul.f32 %v467, %v472
    %v476 = vlaneseq
    %v477 = vshrl.u32 %v476, 7
    %v478 = vsub.s32 0, %v477
    %v479 = vrot.slane %v96, %v478
    %v481 = vadd.f32 %v474, %v479
    %482 = vst.msk [vmem:[#allocation11] sm:$0xf] %vm453, %v481
    %vm483 = vcmask 126016
    %v484 = vsel %vm483, %v354, -inf
    %485 = vmax.xlane.f32.xlu0 %v484
    %v486 = vpop.xlane.xlu0 %485
    %v487 = vsub.f32 %v354, %v486
    %v488 = vmul.f32 %v487, 1.442695
    %v489 = vpow.pop %v488
    %491 = vrot.lane.b32.xlu0 %v489, 120
    %v492 = vpop.permute.xlu0 %491
    %v494 = vsel %vm357, %v492, 0.0
    %495 = vadd.xlane.f32.xlu0 %v494
    %v496 = vpop.xlane.xlu0 %495
    %v497 = vrcp.pop %v496
    %v498 = vmul.f32 %v496, %v497
    %v499 = vsub.f32 2.0, %v498
    %v500 = vmul.f32 %v497, %v499
    %v501 = vmul.f32 %v489, %v500
    %503 = vrot.lane.b32.xlu0 %v501, 120
    %v504 = vpop.permute.xlu0 %503
    %s506 = scalar_lea.vmem [#allocation10], 4
    %507 = vst.msk [vmem:[%s506] sm:$0xf] %vm357, %v504
    %v508 = vsel %vm379, %v504, 0
    %510 = vmatprep.subr.mxu0 0.0
    %511 = vmatpush1.msra.mxu0 %v275
    %512 = vmatprep.subr.mxu0 0.0
    %513 = vmatpush1.msra.mxu0 0.0
    %514 = vmatprep.subr.mxu0 0.0
    %515 = vmatpush1.msra.mxu0 0.0
    %516 = vmatprep.subr.mxu0 0.0
    %517 = vmatpush1.msra.mxu0 0.0
    %518 = vmatprep.subr.mxu0 0.0
    %519 = vmatpush1.msra.mxu0 0.0
    %520 = vmatprep.subr.mxu0 0.0
    %521 = vmatpush1.msra.mxu0 0.0
    %522 = vmatprep.subr.mxu0 0.0
    %523 = vmatpush1.msra.mxu0 0.0
    %524 = vmatprep.subr.mxu0 0.0
    %525 = vmatpush1.msra.mxu0 0.0
    %526 = vmatprep.subr.mxu0 0.0
    %527 = vmatpush1.msra.mxu0 0.0
    %528 = vmatprep.subr.mxu0 0.0
    %529 = vmatpush1.msra.mxu0 0.0
    %530 = vmatprep.subr.mxu0 0.0
    %531 = vmatpush1.msra.mxu0 0.0
    %532 = vmatprep.subr.mxu0 0.0
    %533 = vmatpush1.msra.mxu0 0.0
    %534 = vmatprep.subr.mxu0 0.0
    %535 = vmatpush1.msra.mxu0 0.0
    %536 = vmatprep.subr.mxu0 0.0
    %537 = vmatpush1.msra.mxu0 0.0
    %538 = vmatprep.subr.mxu0 0.0
    %539 = vmatpush1.msra.mxu0 0.0
    %540 = vmatprep.subr.mxu0 0.0
    %541 = vmatpush1.msra.mxu0 0.0
    %542 = vmatprep.subr.mxu0 0.0
    %543 = vmatpush1.msra.mxu0 0.0
    %544 = vmatprep.subr.mxu0 0.0
    %545 = vmatpush1.msra.mxu0 0.0
    %546 = vmatprep.subr.mxu0 0.0
    %547 = vmatpush1.msra.mxu0 0.0
    %548 = vmatprep.subr.mxu0 0.0
    %549 = vmatpush1.msra.mxu0 0.0
    %550 = vmatprep.subr.mxu0 0.0
    %551 = vmatpush1.msra.mxu0 0.0
    %552 = vmatprep.subr.mxu0 0.0
    %553 = vmatpush1.msra.mxu0 0.0
    %554 = vmatprep.subr.mxu0 0.0
    %555 = vmatpush1.msra.mxu0 0.0
    %556 = vmatprep.subr.mxu0 0.0
    %557 = vmatpush1.msra.mxu0 0.0
    %558 = vmatprep.subr.mxu0 0.0
    %559 = vmatpush1.msra.mxu0 0.0
    %560 = vmatprep.subr.mxu0 0.0
    %561 = vmatpush1.msra.mxu0 0.0
    %562 = vmatprep.subr.mxu0 0.0
    %563 = vmatpush1.msra.mxu0 0.0
    %564 = vmatprep.subr.mxu0 0.0
    %565 = vmatpush1.msra.mxu0 0.0
    %566 = vmatprep.subr.mxu0 0.0
    %567 = vmatpush1.msra.mxu0 0.0
    %568 = vmatprep.subr.mxu0 0.0
    %569 = vmatpush1.msra.mxu0 0.0
    %570 = vmatprep.subr.mxu0 0.0
    %571 = vmatpush1.msra.mxu0 0.0
    %572 = vmatprep.subr.mxu0 0.0
    %573 = vmatpush1.msra.mxu0 0.0
    %574 = vmatprep.mubr.f32.mxu0 0.0
    %575 = vmatmul.mubr.f32.gmra.mrb[0].mxu0 %v508
    %v576 = vpop.f32.mrb[0].mxu0
    %v577 = vadd.f32 %v377, %v576
    %v578 = vpop.f32.mrb[0].mxu0
    %579 = vdwg.mxu0
    %v580 = vsel %vm453, %v577, 0.0
    %581 = vadd.xlane.f32.xlu0 %v580
    %v582 = vpop.xlane.xlu0 %581
    %v583 = vmul.f32 %v582, %v457
    %v584 = vsub.f32 %v577, %v583
    %v585 = vmul.f32 %v584, %v584
    %v586 = vsel %vm453, %v585, 0.0
    %587 = vadd.xlane.f32.xlu0 %v586
    %v588 = vpop.xlane.xlu0 %587
    %v589 = vmul.f32 %v588, %v457
    %v590 = vadd.f32 %v589, 1e-05
    %v591 = vrsqrt.pop %v590
    %v592 = vmul.f32 %v584, %v591
    %v593 = vmul.f32 %v592, %v472
    %v594 = vadd.f32 %v593, %v479
    %s595 = scalar_lea.vmem [#allocation11], 4
    %596 = vst.msk [vmem:[%s595] sm:$0xf] %vm453, %v594
    // Predicated region
    $region46: #{tpu_custom_call.1} parent=1 // pred_check
      _
    $region47: #{tpu_custom_call.1} parent=1 // pred_check_branch
      %598 = sbr.rel (0) target = $region49
    $region48: #{tpu_custom_call.1} parent=1 // pred_region
      %s600 = ssub.s32 128, 128
      %601 = vsyncadd [#allocation4], %s600
      %s602 = sshll.u32 [#allocation10], 4
      %s603 = int_to_ptr.vmem [resolvable:$true] %s602
      %608 = dma.vmem_to_hbm [thread:$0]  %s603, 128, %s7, [#allocation4], 64, 64, 4
    $region49: #{tpu_custom_call.1} parent=1 // pred_fallthru
      _
    // Predicated region
    $region50: #{tpu_custom_call.1} parent=1 // pred_check
      _
    $region51: #{tpu_custom_call.1} parent=1 // pred_check_branch
      %610 = sbr.rel (0) target = $region53
    $region52: #{tpu_custom_call.1} parent=1 // pred_region
      %s612 = ssub.s32 128, 128
      %613 = vsyncadd [#allocation12], %s612
      %s614 = sshll.u32 [#allocation11], 4
      %s615 = int_to_ptr.vmem [resolvable:$true] %s614
      %620 = dma.vmem_to_hbm [thread:$0]  %s615, 128, %s8, [#allocation12], 64, 64, 4
    $region53: #{tpu_custom_call.1} parent=1 // pred_fallthru
      _
    // Predicated region
    $region54: #{tpu_custom_call.1} parent=1 // pred_check
      _
    $region55: #{tpu_custom_call.1} parent=1 // pred_check_branch
      %622 = sbr.rel (0) target = $region57
    $region56: #{tpu_custom_call.1} parent=1 // pred_region
      %623 = dma.done [#allocation4], 128
    $region57: #{tpu_custom_call.1} parent=1 // pred_fallthru
      _
    // Predicated region
    $region58: #{tpu_custom_call.1} parent=1 // pred_check
      _
    $region59: #{tpu_custom_call.1} parent=1 // pred_check_branch
      %625 = sbr.rel (0) target = $region61
    $region60: #{tpu_custom_call.1} parent=1 // pred_region
      %626 = dma.done [#allocation12], 128
    $region61: #{tpu_custom_call.1} parent=1 // pred_fallthru
      _
    %627 = vsyncpa [#allocation3], 1
    %628 = vsyncpa [#allocation6], 1
    %629 = vsyncpa [#allocation9], 1
    %630 = vsyncpa [#allocation4], 1
    %631 = vsyncpa [#allocation12], 1

</llo_original>
